<compile_context>
chip_gen: v6e
topology: v6e:2x2x1
jax: 0.10.0
libtpu: 0.0.40
codegen_flags: <defaults>
</compile_context>

<pallas_src>
import math

import jax
import jax.numpy as jnp
from jax import lax
from jax.experimental import pallas as pl
from jax.experimental.pallas import tpu as pltpu

_LANES = 128
_FAST_PATH_MAX_BYTES = 1024 * 1024        # below this, pure JAX beats a kernel launch
_TARGET_BLOCK_BYTES = 4 * 1024 * 1024     # per-input per-buffer tile budget
_VMEM_LIMIT_BYTES = 32 * 1024 * 1024


def _as_2d(x):
    """View x as 2-D without copies for the canonical [batch, action_dim] case."""
    if x.ndim == 2:
        return x
    if x.ndim > 2:
        # TODO(synk): collapsing leading dims may relayout on TPU tiled HBM layouts;
        # canonical inputs are 2-D so this path is rarely taken.
        return x.reshape(-1, x.shape[-1])
    n = x.size
    if n % _LANES == 0:
        return x.reshape(n // _LANES, _LANES)
    return x.reshape(1, n)


def _make_partial_sum_kernel(tb, pr, cols, rows, weighted, needs_mask):
    """Per-tile squared-error partial sum: (tb, cols) inputs -> (pr, cols) f32 partial."""

    def kernel(*refs):
        if weighted:
            pred_ref, targ_ref, w_ref, out_ref = refs
        else:
            pred_ref, targ_ref, out_ref = refs
        d = pred_ref[...].astype(jnp.float32) - targ_ref[...].astype(jnp.float32)
        loss = d * d
        if weighted:
            loss = loss * w_ref[...].astype(jnp.float32)
        if needs_mask:
            # Only the last tile is partial; mask out-of-range rows (garbage reads) to zero.
            row_ids = pl.program_id(0) * tb + lax.broadcasted_iota(jnp.int32, loss.shape, 0)
            loss = jnp.where(row_ids < rows, loss, 0.0)
        # Layout-preserving leading-dim split -> pure VPU vreg adds down to (pr, cols).
        out_ref[0] = loss.reshape(tb // pr, pr, cols).sum(axis=0)

    return kernel


def weighted_loss(pred, targ, weights=1.0, *,
                  min_pallas_bytes=_FAST_PATH_MAX_BYTES,
                  max_block_bytes=_TARGET_BLOCK_BYTES):
    """Pallas equivalent of WeightedLoss.forward with an L2 elementwise loss."""
    pred = jnp.asarray(pred)
    targ = jnp.asarray(targ)
    n = pred.size
    inv_n = jnp.float32(1.0 / n) if n else jnp.float32(jnp.nan)
    w = jnp.asarray(weights)
    scalar_w = (w.size == 1)  # covers python scalars, (), (1,), (1,1)

    # ---- tiny-input fast path: launch overhead would dominate a pure streaming reduce ----
    if n == 0 or pred.ndim == 0 or n * pred.dtype.itemsize < min_pallas_bytes:
        d = pred.astype(jnp.float32) - targ.astype(jnp.float32)
        loss = d * d
        if scalar_w:
            return jnp.sum(loss) * inv_n * w.reshape(()).astype(jnp.float32)
        wb = jnp.broadcast_to(w, pred.shape).astype(jnp.float32)
        return jnp.sum(loss * wb) * inv_n

    # ---- zero-copy 2-D views (no pad, no broadcast materialization for full-shape weights) ----
    pred2 = _as_2d(pred)
    targ2 = _as_2d(targ)
    rows, cols = pred2.shape

    weighted = not scalar_w
    if weighted:
        if w.shape == pred.shape:
            w2 = _as_2d(w)                      # native dtype, no copy
        else:
            # TODO(synk): broadcastable-but-not-full weights (e.g. per-row (B,1)) could be
            # streamed as a small (tb,1) block and broadcast in-kernel; fall back to
            # materializing for now (correct, but an extra HBM stream).
            w2 = _as_2d(jnp.broadcast_to(w, pred.shape))

    # ---- dtype-aware tile sizing (sublane packing: f32->8, bf16->16, int8->32 rows) ----
    itemsizes = [pred2.dtype.itemsize, targ2.dtype.itemsize]
    if weighted:
        itemsizes.append(w2.dtype.itemsize)
    sub = max(32 // s for s in itemsizes)
    max_rows = max(sub, (max_block_bytes // (cols * 4)) // sub * sub)
    tb = rows if rows <= max_rows else max_rows
    num_tiles = -(-rows // tb)
    needs_mask = (rows % tb) != 0
    pr = math.gcd(tb, 8)

    kernel = _make_partial_sum_kernel(tb, pr, cols, rows, weighted, needs_mask)
    in_spec = pl.BlockSpec((tb, cols), lambda i: (i, 0))
    out_spec = pl.BlockSpec((1, pr, cols), lambda i: (i, 0, 0))
    out_shape = jax.ShapeDtypeStruct((num_tiles, pr, cols), jnp.float32)

    streamed_bytes = n * (pred2.dtype.itemsize + targ2.dtype.itemsize)
    if weighted:
        streamed_bytes += n * w2.dtype.itemsize
    cost = pl.CostEstimate(
        flops=(4 if weighted else 3) * n,
        transcendentals=0,
        bytes_accessed=streamed_bytes + num_tiles * pr * cols * 4,
    )
    cparams = pltpu.CompilerParams(
        dimension_semantics=("parallel",),       # independent per-tile partials (megacore on v7x)
        vmem_limit_bytes=_VMEM_LIMIT_BYTES,      # 24 MiB of buffers fits; load-bearing on v5e
    )

    operands = (pred2, targ2, w2) if weighted else (pred2, targ2)
    partials = pl.pallas_call(
        kernel,
        out_shape=out_shape,
        grid_spec=pltpu.PrefetchScalarGridSpec(
            num_scalar_prefetch=0,
            grid=(num_tiles,),
            in_specs=[in_spec] * len(operands),
            out_specs=out_spec,
        ),
        compiler_params=cparams,
        cost_estimate=cost,
    )(*operands)

    total = jnp.sum(partials)                    # tiny (num_tiles, pr, cols) reduce in XLA
    if scalar_w:
        return total * inv_n * w.reshape(()).astype(jnp.float32)
    return total * inv_n


def _reference(pred, targ, weights=1.0):
    d = jnp.asarray(pred).astype(jnp.float32) - jnp.asarray(targ).astype(jnp.float32)
    loss = d * d
    return jnp.mean(loss * jnp.asarray(weights).astype(jnp.float32))


if __name__ == "__main__":
    keys = jax.random.split(jax.random.PRNGKey(0), 12)

    # Shape from the module docstring: pred, targ : [batch_size x action_dim]
    B_s, A_s = 8, 32
    pred_s = jax.random.normal(keys[0], (B_s, A_s), dtype=jnp.float32)
    targ_s = jax.random.normal(keys[1], (B_s, A_s), dtype=jnp.float32)
    w_s = jax.random.uniform(keys[2], (B_s, A_s), dtype=jnp.float32)

    # Medium shape forced through Pallas with a small tile budget to exercise
    # multi-tile streaming + the in-kernel tail-row mask (2048 % 160 != 0).
    B_m, A_m = 2048, 100
    pred_m = jax.random.normal(keys[3], (B_m, A_m), dtype=jnp.float32)
    targ_m = jax.random.normal(keys[4], (B_m, A_m), dtype=jnp.float32)
    w_m = jax.random.uniform(keys[5], (B_m, A_m), dtype=jnp.float32)

    # Large enough (>1 MiB) to take the Pallas path with default thresholds.
    B_l, A_l = 4096, 100
    pred_l = jax.random.normal(keys[6], (B_l, A_l), dtype=jnp.float32)
    targ_l = jax.random.normal(keys[7], (B_l, A_l), dtype=jnp.float32)

    # bf16 inputs + f32 weights: exercises dtype-aware sublane rounding (16-row multiple).
    B_h, A_h = 512, 256
    pred_h = jax.random.normal(keys[8], (B_h, A_h), dtype=jnp.float32).astype(jnp.bfloat16)
    targ_h = jax.random.normal(keys[9], (B_h, A_h), dtype=jnp.float32).astype(jnp.bfloat16)
    w_h = jax.random.uniform(keys[10], (B_h, A_h), dtype=jnp.float32)

    small_blk = dict(min_pallas_bytes=0, max_block_bytes=64 * 1024)
    checks = [
        # tiny shape, default weights=1.0 -> pure-JAX fast path
        (weighted_loss(pred_s, targ_s), _reference(pred_s, targ_s)),
        # tiny shape forced through the Pallas 3-input kernel (single tile, no mask)
        (weighted_loss(pred_s, targ_s, w_s, min_pallas_bytes=0), _reference(pred_s, targ_s, w_s)),
        # scalar weight, multi-tile + tail mask -> 2-input kernel (no weights stream)
        (weighted_loss(pred_m, targ_m, 0.5, **small_blk), _reference(pred_m, targ_m, 0.5)),
        # per-element weights, multi-tile + tail mask -> 3-input kernel
        (weighted_loss(pred_m, targ_m, w_m, **small_blk), _reference(pred_m, targ_m, w_m)),
        # size-1 weights array (1,1) routes to the scalar (2-input) path
        (weighted_loss(pred_m, targ_m, jnp.full((1, 1), 0.5, jnp.float32), **small_blk),
         _reference(pred_m, targ_m, 0.5)),
        # >1 MiB input takes the Pallas path with default thresholds (single big tile)
        (weighted_loss(pred_l, targ_l), _reference(pred_l, targ_l)),
        # bf16 inputs, f32 per-element weights (16-row sublane rounding, 16 tiles)
        (weighted_loss(pred_h, targ_h, w_h, min_pallas_bytes=0, max_block_bytes=32 * 1024),
         _reference(pred_h, targ_h, w_h)),
    ]

    for out, ref in checks:
        out = jax.block_until_ready(out)
        ref = jax.block_until_ready(ref)
        assert jnp.allclose(out, ref, rtol=1e-4, atol=1e-5), (out, ref)

    print("KERNEL_OK")
</pallas_src>

<mosaic_0001>
module attributes {stable_mosaic.version = 11 : i64} {
  func.func @kernel(%arg0: i32, %arg1: memref<8x32xf32, #tpu.memory_space<vmem>>, %arg2: memref<8x32xf32, #tpu.memory_space<vmem>>, %arg3: memref<8x32xf32, #tpu.memory_space<vmem>>, %arg4: memref<1x8x32xf32, #tpu.memory_space<vmem>>) attributes {dimension_semantics = [#tpu.dimension_semantics<parallel>], iteration_bounds = array<i64: 1>, scalar_prefetch = 0 : i64, scratch_operands = 0 : i64, tpu.core_type = #tpu.core_type<tc>, window_params = [{transform_indices = @transform_0, window_bounds = array<i64: 8, 32>}, {transform_indices = @transform_1, window_bounds = array<i64: 8, 32>}, {transform_indices = @transform_2, window_bounds = array<i64: 8, 32>}, {transform_indices = @transform_3, window_bounds = array<i64: 1, 8, 32>}]} {
    %c0 = arith.constant 0 : index
    %c0_0 = arith.constant 0 : index
    %0 = vector.load %arg1[%c0, %c0_0] : memref<8x32xf32, #tpu.memory_space<vmem>>, vector<8x32xf32>
    %c0_1 = arith.constant 0 : index
    %c0_2 = arith.constant 0 : index
    %1 = vector.load %arg2[%c0_1, %c0_2] : memref<8x32xf32, #tpu.memory_space<vmem>>, vector<8x32xf32>
    %2 = arith.subf %0, %1 : vector<8x32xf32>
    %3 = arith.mulf %2, %2 : vector<8x32xf32>
    %c0_3 = arith.constant 0 : index
    %c0_4 = arith.constant 0 : index
    %4 = vector.load %arg3[%c0_3, %c0_4] : memref<8x32xf32, #tpu.memory_space<vmem>>, vector<8x32xf32>
    %5 = arith.mulf %3, %4 : vector<8x32xf32>
    %6 = vector.shape_cast %5 : vector<8x32xf32> to vector<1x8x32xf32>
    %cst = arith.constant dense<0.000000e+00> : vector<8x32xf32>
    %7 = vector.multi_reduction <add>, %6, %cst [0] : vector<1x8x32xf32> to vector<8x32xf32>
    %c0_5 = arith.constant 0 : index
    %c0_6 = arith.constant 0 : index
    %c0_7 = arith.constant 0 : index
    %8 = vector.load %arg4[%c0_5, %c0_6, %c0_7] : memref<1x8x32xf32, #tpu.memory_space<vmem>>, vector<1x8x32xf32>
    %9 = vector.shape_cast %8 : vector<1x8x32xf32> to vector<8x32xf32>
    %10 = vector.shape_cast %7 : vector<8x32xf32> to vector<1x8x32xf32>
    tpu.vector_store %arg4[%c0_5, %c0_6, %c0_7], %10 {strides = array<i32>} : memref<1x8x32xf32, #tpu.memory_space<vmem>>, vector<1x8x32xf32>,
    return
  }
  func.func @transform_0(%arg0: i32) -> (i32, i32) {
    %c0_i32 = arith.constant 0 : i32
    %c0_i32_0 = arith.constant 0 : i32
    return %arg0, %c0_i32 : i32, i32
  }
  func.func @transform_1(%arg0: i32) -> (i32, i32) {
    %c0_i32 = arith.constant 0 : i32
    %c0_i32_0 = arith.constant 0 : i32
    return %arg0, %c0_i32 : i32, i32
  }
  func.func @transform_2(%arg0: i32) -> (i32, i32) {
    %c0_i32 = arith.constant 0 : i32
    %c0_i32_0 = arith.constant 0 : i32
    return %arg0, %c0_i32 : i32, i32
  }
  func.func @transform_3(%arg0: i32) -> (i32, i32, i32) {
    %c0_i32 = arith.constant 0 : i32
    %c0_i32_0 = arith.constant 0 : i32
    %c0_i32_1 = arith.constant 0 : i32
    return %arg0, %c0_i32, %c0_i32_0 : i32, i32, i32
  }
}

</mosaic_0001>

<llo_original>
// kernel: tpu_custom_call.1
$region0: #{tpu_custom_call.1}
  #allocation0 [shape = 'u32[]', space=smem, size = 0x4, offset = 0x4, fixed_abs, tag = 'smem constant byte address 0x4 - core index']
  #allocation1 [shape = 'u32[144,128]{1,0:T(1,128)}', space=vmem, size = 0x12000, scoped, tag = 'internal scratch']
  %s0 = inlined_call_operand.hbm [shape: f32[8,32], index: 0, kind: input, shape index: {}]
  %s1 = inlined_call_operand.hbm [shape: f32[8,32], index: 1, kind: input, shape index: {}]
  %s2 = inlined_call_operand.hbm [shape: f32[8,32], index: 2, kind: input, shape index: {}]
  %s3 = inlined_call_operand.hbm [shape: f32[1,8,32], index: 3, kind: output, shape index: {}]
  %s4 = sld [smem:[#allocation0]]
  $region34: #{tpu_custom_call.1} parent=0
    _
  %s6 = ssub.s32 1, %s4
  %s7 = scalar_select 0, %s6, %s4
  $region1: #{tpu_custom_call.1} parent=0
    #allocation2 [shape = 'u8[4096]{0}', space=vmem, size = 0x1000, scoped, tag = 'input window, operand 0, single buffered']
    #allocation3 [shape = 's32[1]{0}', space=sflag, size = 0x4, scoped, tag = 'scoped memory for tpu_custom_call.1']
    #allocation4 [shape = 's32[1]{0}', space=sflag, size = 0x4, scoped, tag = 'scoped memory for tpu_custom_call.1']
    #allocation5 [shape = 'u8[4096]{0}', space=vmem, size = 0x1000, scoped, tag = 'input window, operand 1, single buffered']
    #allocation6 [shape = 's32[1]{0}', space=sflag, size = 0x4, scoped, tag = 'scoped memory for tpu_custom_call.1']
    #allocation7 [shape = 'u8[4096]{0}', space=vmem, size = 0x1000, scoped, tag = 'input window, operand 2, single buffered']
    #allocation8 [shape = 'u8[4096]{0}', space=vmem, size = 0x1000, scoped, tag = 'output window, operand 0, single buffered']
    %8 = vsyncpa [#allocation3], 0
    %9 = vsyncpa [#allocation6], 0
    %10 = vsyncpa [#allocation4], 0
    // Predicated region
    $region2: #{tpu_custom_call.1} parent=1 // pred_check
      _
    $region3: #{tpu_custom_call.1} parent=1 // pred_check_branch
      %12 = sbr.rel (0) target = $region5
    $region4: #{tpu_custom_call.1} parent=1 // pred_region
      %s14 = ssub.s32 128, 128
      %15 = vsyncadd [#allocation3], %s14
      %s17 = sshll.u32 [#allocation2], 4
      %s18 = int_to_ptr.vmem [resolvable:$true] %s17
      %20 = dma.hbm_to_vmem [thread:$0]  %s0, 128, %s18, [#allocation3]
    $region5: #{tpu_custom_call.1} parent=1 // pred_fallthru
      _
    // Predicated region
    $region6: #{tpu_custom_call.1} parent=1 // pred_check
      _
    $region7: #{tpu_custom_call.1} parent=1 // pred_check_branch
      %22 = sbr.rel (0) target = $region9
    $region8: #{tpu_custom_call.1} parent=1 // pred_region
      %s24 = ssub.s32 128, 128
      %25 = vsyncadd [#allocation6], %s24
      %s27 = sshll.u32 [#allocation5], 4
      %s28 = int_to_ptr.vmem [resolvable:$true] %s27
      %30 = dma.hbm_to_vmem [thread:$0]  %s1, 128, %s28, [#allocation6]
    $region9: #{tpu_custom_call.1} parent=1 // pred_fallthru
      _
    // Predicated region
    $region10: #{tpu_custom_call.1} parent=1 // pred_check
      _
    $region11: #{tpu_custom_call.1} parent=1 // pred_check_branch
      %32 = sbr.rel (0) target = $region13
    $region12: #{tpu_custom_call.1} parent=1 // pred_region
      %s34 = ssub.s32 128, 128
      %35 = vsyncadd [#allocation6], %s34
      %s37 = sshll.u32 [#allocation7], 4
      %s38 = int_to_ptr.vmem [resolvable:$true] %s37
      %40 = dma.hbm_to_vmem [thread:$0]  %s2, 128, %s38, [#allocation6]
    $region13: #{tpu_custom_call.1} parent=1 // pred_fallthru
      _
    // Predicated region
    $region14: #{tpu_custom_call.1} parent=1 // pred_check
      _
    $region15: #{tpu_custom_call.1} parent=1 // pred_check_branch
      %42 = sbr.rel (0) target = $region17
    $region16: #{tpu_custom_call.1} parent=1 // pred_region
      %43 = dma.done [#allocation3], 128
    $region17: #{tpu_custom_call.1} parent=1 // pred_fallthru
      _
    // Predicated region
    $region18: #{tpu_custom_call.1} parent=1 // pred_check
      _
    $region19: #{tpu_custom_call.1} parent=1 // pred_check_branch
      %45 = sbr.rel (0) target = $region21
    $region20: #{tpu_custom_call.1} parent=1 // pred_region
      %46 = dma.done [#allocation6], 128
    $region21: #{tpu_custom_call.1} parent=1 // pred_fallthru
      _
    // Predicated region
    $region22: #{tpu_custom_call.1} parent=1 // pred_check
      _
    $region23: #{tpu_custom_call.1} parent=1 // pred_check_branch
      %48 = sbr.rel (0) target = $region25
    $region24: #{tpu_custom_call.1} parent=1 // pred_region
      %49 = dma.done [#allocation6], 128
    $region25: #{tpu_custom_call.1} parent=1 // pred_fallthru
      _
    %v50 = vld [vmem:[#allocation2] sm:$0xff]
    %v51 = vld [vmem:[#allocation5] sm:$0xff]
    %v52 = vsub.f32 %v50, %v51
    %v53 = vmul.f32 %v52, %v52
    %v54 = vld [vmem:[#allocation7] sm:$0xff]
    %v55 = vmul.f32 %v53, %v54
    %v56 = vadd.f32 %v55, 0.0
    %vm57 = vcmask 261120
    %58 = vst.msk [vmem:[#allocation8] sm:$0xff] %vm57, %v56
    // Predicated region
    $region26: #{tpu_custom_call.1} parent=1 // pred_check
      _
    $region27: #{tpu_custom_call.1} parent=1 // pred_check_branch
      %60 = sbr.rel (0) target = $region29
    $region28: #{tpu_custom_call.1} parent=1 // pred_region
      %s62 = ssub.s32 128, 128
      %63 = vsyncadd [#allocation4], %s62
      %s65 = sshll.u32 [#allocation8], 4
      %s66 = int_to_ptr.vmem [resolvable:$true] %s65
      %68 = dma.vmem_to_hbm [thread:$0]  %s66, 128, %s3, [#allocation4]
    $region29: #{tpu_custom_call.1} parent=1 // pred_fallthru
      _
    // Predicated region
    $region30: #{tpu_custom_call.1} parent=1 // pred_check
      _
    $region31: #{tpu_custom_call.1} parent=1 // pred_check_branch
      %70 = sbr.rel (0) target = $region33
    $region32: #{tpu_custom_call.1} parent=1 // pred_region
      %71 = dma.done [#allocation4], 128
    $region33: #{tpu_custom_call.1} parent=1 // pred_fallthru
      _
    %72 = vsyncpa [#allocation3], 1
    %73 = vsyncpa [#allocation6], 1
    %74 = vsyncpa [#allocation4], 1

</llo_original>
